<compile_context>
chip_gen: v7x
topology: tpu7x:2x2x1
jax: 0.10.0
libtpu: 0.0.40
codegen_flags: <defaults>
</compile_context>

<pallas_src>
import jax
import jax.numpy as jnp
from jax.experimental import pallas as pl
from jax.experimental.pallas import tpu as pltpu


def _mish_kernel(x_ref, o_ref):
    # Compute in f32 inside VMEM (v5e has no bf16 VPU/EUP); cast only on the
    # final store so there is no extra HBM pass in the wrapper.
    x = x_ref[...].astype(jnp.float32)
    # tanh(softplus(x)) == 1 - 2 / ((1 + e^x)^2 + 1)
    #   - single EUP exp (plus one divide) instead of exp + log1p + tanh
    #   - exact divide (NOT pl.reciprocal(approx=True)): approx recip's ~2^-12
    #     relative error would break the 1e-5 tolerance for |x| ~ O(10).
    e = jnp.exp(x)
    denom = (1.0 + e) * (1.0 + e) + 1.0
    t = 1.0 - 2.0 / denom
    # Overflow guard: for large x, exp(x)=inf already yields t=1 (mish -> x),
    # but make it explicit / branch-free for safety.
    y = jnp.where(x > 20.0, x, x * t)
    o_ref[...] = y.astype(o_ref.dtype)


def _mish_bulk(x2, block_rows, cols, grid, dtype, n_bytes):
    """Run the Pallas kernel over a lane-dense (rows, cols) slab."""
    rows = x2.shape[0]
    return pl.pallas_call(
        _mish_kernel,
        out_shape=jax.ShapeDtypeStruct((rows, cols), dtype),
        grid=grid,
        in_specs=[pl.BlockSpec((block_rows, cols), lambda i: (i, 0))],
        out_specs=pl.BlockSpec((block_rows, cols), lambda i: (i, 0)),
        compiler_params=pltpu.CompilerParams(
            # "parallel" lets v7x shard the grid across its 2 TensorCores.
            dimension_semantics=("parallel",),
            # 4 MiB blocks, in+out double-buffered -> 16 MiB in flight; raise the
            # scoped VMEM limit so v5e's 16 MiB default doesn't reject it while
            # staying well under v7x's 64 MiB physical VMEM.
            vmem_limit_bytes=32 * 1024 * 1024,
        ),
        cost_estimate=pl.CostEstimate(
            flops=7 * rows * cols,           # adds/muls/divide/select per element (rough)
            transcendentals=2 * rows * cols,  # exp + reciprocal
            bytes_accessed=2 * n_bytes,       # one read + one write pass over the slab
        ),
    )(x2)


def pallas_mish(x: jax.Array) -> jax.Array:
    """Mish activation (x * tanh(softplus(x))) via a Pallas TPU kernel.

    Works for any input shape.  The lane-aligned bulk (a multiple of 128
    elements) is processed by the kernel as a lane-dense (rows, cols) slab with
    no padding; a ragged tail of < 128 elements (rare for NN activations) is
    handled by a tiny plain-jnp op.
    """
    orig_shape = x.shape
    dtype = x.dtype
    n = int(x.size)
    if n == 0:
        return x

    x_flat = x.reshape(-1)

    LANE = 128
    n_main = (n // LANE) * LANE
    n_tail = n - n_main

    pieces = []
    if n_main > 0:
        # Largest lane-dense column width that divides the bulk exactly -> no pad.
        cols = next(c for c in (1024, 512, 256, 128) if n_main % c == 0)
        rows = n_main // cols
        itemsize = jnp.dtype(dtype).itemsize

        # Block sizing: ~4 MiB per block to amortize per-step overhead, but keep
        # a few grid steps for software pipelining / v7x megacore sharding.
        TARGET_TILE_BYTES = 4 * 1024 * 1024
        MIN_GRID_STEPS = 4
        if rows <= 8:
            block_rows = rows  # single block == full array dims (exempt from (8,128))
        else:
            budget_rows = max(8, (TARGET_TILE_BYTES // (cols * itemsize)) // 8 * 8)
            pipeline_rows = max(8, (rows // MIN_GRID_STEPS) // 8 * 8)
            block_rows = min(budget_rows, pipeline_rows)
        grid = (pl.cdiv(rows, block_rows),)

        x_main = x_flat if n_tail == 0 else x_flat[:n_main]
        x2 = x_main.reshape(rows, cols)
        out2 = _mish_bulk(x2, block_rows, cols, grid, dtype, n_main * itemsize)
        pieces.append(out2.reshape(-1))

    if n_tail > 0:
        # Tiny (<128-element) ragged tail: plain jnp, negligible cost.
        xt = x_flat[n_main:].astype(jnp.float32)
        pieces.append((xt * jnp.tanh(jax.nn.softplus(xt))).astype(dtype))

    out_flat = pieces[0] if len(pieces) == 1 else jnp.concatenate(pieces)
    return out_flat.reshape(orig_shape)


if __name__ == "__main__":
    # Small deterministic input consistent with an activation module:
    # (batch=2, channels=4, spatial=16x16) -> 2048 elements -> (2, 1024) slab.
    key = jax.random.PRNGKey(0)
    x = jax.random.normal(key, (2, 4, 16, 16), dtype=jnp.float32) * 3.0

    out = pallas_mish(x)
    out = jax.block_until_ready(out)

    # Reference: x * tanh(softplus(x)) in plain JAX (same semantics as the
    # PyTorch module; torch's Softplus threshold=20 matches well below tol).
    ref = x * jnp.tanh(jax.nn.softplus(x))
    assert out.shape == ref.shape and out.dtype == ref.dtype
    assert jnp.allclose(out, ref, atol=1e-5, rtol=1e-5), "mismatch vs reference Mish"

    print("KERNEL_OK")
</pallas_src>

<mosaic_0001>
module attributes {stable_mosaic.version = 11 : i64} {
  func.func @_mish_kernel(%arg0: i32, %arg1: memref<2x1024xf32, #tpu.memory_space<vmem>>, %arg2: memref<2x1024xf32, #tpu.memory_space<vmem>>) attributes {dimension_semantics = [#tpu.dimension_semantics<parallel>], iteration_bounds = array<i64: 1>, scalar_prefetch = 0 : i64, scratch_operands = 0 : i64, tpu.core_type = #tpu.core_type<tc>, window_params = [{transform_indices = @transform_0, window_bounds = array<i64: 2, 1024>}, {transform_indices = @transform_1, window_bounds = array<i64: 2, 1024>}]} {
    %c0 = arith.constant 0 : index
    %c0_0 = arith.constant 0 : index
    %0 = vector.load %arg1[%c0, %c0_0] : memref<2x1024xf32, #tpu.memory_space<vmem>>, vector<2x1024xf32>
    %1 = math.exp %0 : vector<2x1024xf32>
    %cst = arith.constant 1.000000e+00 : f32
    %2 = vector.broadcast %cst : f32 to vector<2x1024xf32>
    %3 = arith.addf %2, %1 : vector<2x1024xf32>
    %cst_1 = arith.constant 1.000000e+00 : f32
    %4 = vector.broadcast %cst_1 : f32 to vector<2x1024xf32>
    %5 = arith.addf %4, %1 : vector<2x1024xf32>
    %6 = arith.mulf %3, %5 : vector<2x1024xf32>
    %cst_2 = arith.constant 1.000000e+00 : f32
    %7 = vector.broadcast %cst_2 : f32 to vector<2x1024xf32>
    %8 = arith.addf %6, %7 : vector<2x1024xf32>
    %cst_3 = arith.constant 2.000000e+00 : f32
    %9 = vector.broadcast %cst_3 : f32 to vector<2x1024xf32>
    %10 = arith.divf %9, %8 : vector<2x1024xf32>
    %cst_4 = arith.constant 1.000000e+00 : f32
    %11 = vector.broadcast %cst_4 : f32 to vector<2x1024xf32>
    %12 = arith.subf %11, %10 : vector<2x1024xf32>
    %cst_5 = arith.constant 2.000000e+01 : f32
    %13 = vector.broadcast %cst_5 : f32 to vector<2x1024xf32>
    %14 = arith.cmpf ogt, %0, %13 : vector<2x1024xf32>
    %15 = arith.mulf %0, %12 : vector<2x1024xf32>
    %16 = arith.select %14, %0, %15 : vector<2x1024xi1>, vector<2x1024xf32>
    %c0_6 = arith.constant 0 : index
    %c0_7 = arith.constant 0 : index
    %17 = vector.load %arg2[%c0_6, %c0_7] : memref<2x1024xf32, #tpu.memory_space<vmem>>, vector<2x1024xf32>
    tpu.vector_store %arg2[%c0_6, %c0_7], %16 {strides = array<i32>} : memref<2x1024xf32, #tpu.memory_space<vmem>>, vector<2x1024xf32>,
    return
  }
  func.func @transform_0(%arg0: i32) -> (i32, i32) {
    %c0_i32 = arith.constant 0 : i32
    %c0_i32_0 = arith.constant 0 : i32
    return %arg0, %c0_i32 : i32, i32
  }
  func.func @transform_1(%arg0: i32) -> (i32, i32) {
    %c0_i32 = arith.constant 0 : i32
    %c0_i32_0 = arith.constant 0 : i32
    return %arg0, %c0_i32 : i32, i32
  }
}

</mosaic_0001>

<llo_original>
// kernel: tpu_custom_call.1
$region0: #{tpu_custom_call.1}
  #allocation0 [shape = 'u32[]', space=smem, size = 0x4, offset = 0x4, fixed_abs, tag = 'smem constant byte address 0x4 - core index']
  #allocation1 [shape = 'u32[144,128]{1,0:T(1,128)}', space=vmem, size = 0x12000, scoped, tag = 'internal scratch']
  %s0 = inlined_call_operand.hbm [shape: f32[2,1024], index: 0, kind: input, shape index: {}]
  %s1 = inlined_call_operand.hbm [shape: f32[2,1024], index: 1, kind: output, shape index: {}]
  %s2 = sld [smem:[#allocation0]]
  $region18: #{tpu_custom_call.1} parent=0
    _
  %s4 = ssub.s32 1, %s2
  %s5 = scalar_select 0, %s4, %s2
  $region1: #{tpu_custom_call.1} parent=0
    #allocation2 [shape = 'u8[8192]{0}', space=vmem, size = 0x2000, scoped, tag = 'input window, operand 0, single buffered']
    #allocation3 [shape = 's32[1]{0}', space=sflag, size = 0x4, scoped, tag = 'scoped memory for tpu_custom_call.1']
    #allocation4 [shape = 's32[1]{0}', space=sflag, size = 0x4, scoped, tag = 'scoped memory for tpu_custom_call.1']
    #allocation5 [shape = 'u8[8192]{0}', space=vmem, size = 0x2000, scoped, tag = 'output window, operand 0, single buffered']
    %6 = vsyncpa [#allocation3], 0
    %7 = vsyncpa [#allocation4], 0
    // Predicated region
    $region2: #{tpu_custom_call.1} parent=1 // pred_check
      _
    $region3: #{tpu_custom_call.1} parent=1 // pred_check_branch
      %9 = sbr.rel (0) target = $region5
    $region4: #{tpu_custom_call.1} parent=1 // pred_region
      %s11 = ssub.s32 256, 256
      %12 = vsyncadd [#allocation3], %s11
      %s14 = sshll.u32 [#allocation2], 4
      %s15 = int_to_ptr.vmem [resolvable:$true] %s14
      %17 = dma.hbm_to_vmem [thread:$0]  %s0, 256, %s15, [#allocation3]
    $region5: #{tpu_custom_call.1} parent=1 // pred_fallthru
      _
    // Predicated region
    $region6: #{tpu_custom_call.1} parent=1 // pred_check
      _
    $region7: #{tpu_custom_call.1} parent=1 // pred_check_branch
      %19 = sbr.rel (0) target = $region9
    $region8: #{tpu_custom_call.1} parent=1 // pred_region
      %20 = dma.done [#allocation3], 256
    $region9: #{tpu_custom_call.1} parent=1 // pred_fallthru
      _
    %v21 = vld [vmem:[#allocation2] sm:$0xff]
    %v22 = vld [vmem:[#allocation2 + $0x8] sm:$0xff]
    %v23 = vmul.f32 %v21, 1.442695
    %v24 = vpow.pop %v23
    %v25 = vmul.f32 %v22, 1.442695
    %v26 = vpow.pop %v25
    %v27 = vadd.f32 %v24, 1.0
    %v28 = vadd.f32 %v26, 1.0
    %v29 = vmul.f32 %v27, %v27
    %v30 = vmul.f32 %v28, %v28
    %v31 = vadd.f32 %v29, 1.0
    %v32 = vadd.f32 %v30, 1.0
    %v33 = vrcp.pop %v31
    %v34 = vmul.f32 2.0, %v33
    %v35 = vrcp.pop %v32
    %v36 = vmul.f32 2.0, %v35
    %v37 = vsub.f32 1.0, %v34
    %v38 = vsub.f32 1.0, %v36
    %vm39 = vcmp.gt.f32.partialorder %v21, 20.0
    %vm40 = vcmp.gt.f32.partialorder %v22, 20.0
    %v41 = vmul.f32 %v21, %v37
    %v42 = vmul.f32 %v22, %v38
    %v43 = vsel %vm39, %v21, %v41
    %v44 = vsel %vm40, %v22, %v42
    %45 = vst [vmem:[#allocation5] sm:$0xff] %v43
    %46 = vst [vmem:[#allocation5 + $0x8] sm:$0xff] %v44
    // Predicated region
    $region10: #{tpu_custom_call.1} parent=1 // pred_check
      _
    $region11: #{tpu_custom_call.1} parent=1 // pred_check_branch
      %48 = sbr.rel (0) target = $region13
    $region12: #{tpu_custom_call.1} parent=1 // pred_region
      %s50 = ssub.s32 256, 256
      %51 = vsyncadd [#allocation4], %s50
      %s53 = sshll.u32 [#allocation5], 4
      %s54 = int_to_ptr.vmem [resolvable:$true] %s53
      %56 = dma.vmem_to_hbm [thread:$0]  %s54, 256, %s1, [#allocation4]
    $region13: #{tpu_custom_call.1} parent=1 // pred_fallthru
      _
    // Predicated region
    $region14: #{tpu_custom_call.1} parent=1 // pred_check
      _
    $region15: #{tpu_custom_call.1} parent=1 // pred_check_branch
      %58 = sbr.rel (0) target = $region17
    $region16: #{tpu_custom_call.1} parent=1 // pred_region
      %59 = dma.done [#allocation4], 256
    $region17: #{tpu_custom_call.1} parent=1 // pred_fallthru
      _
    %60 = vsyncpa [#allocation3], 1
    %61 = vsyncpa [#allocation4], 1

</llo_original>
